<compile_context>
chip_gen: v5e
topology: v5e:2x2
jax: 0.10.0
libtpu: 0.0.40
codegen_flags: <defaults>
</compile_context>

<pallas_src>
import math
import random

import jax
import jax.numpy as jnp
import numpy as np
from jax.experimental import pallas as pl
from jax.experimental.pallas import tpu as pltpu  # noqa: F401  (kept for TPU-specific tuning hooks)


# ---------------------------------------------------------------------------
# Pallas kernel: one fused DCGRU cell update for the whole batch (no grid).
# ---------------------------------------------------------------------------
def _dcgru_cell_kernel(a_ref, z_ref, h_ref, wall_ref, ball_ref, wch_ref, newh_ref):
    f32 = jnp.float32
    bf16 = jnp.bfloat16

    JN, N = a_ref.shape
    J = JN // N
    BN, Fin = z_ref.shape
    B = BN // N
    H = h_ref.shape[1]

    def to_lanes(rows):
        # (B*N, W) -> (N, B*W):  out[k, b*W + w] = rows[b*N + k, w]
        blocks = [rows[b * N:(b + 1) * N, :] for b in range(B)]
        return blocks[0] if B == 1 else jnp.concatenate(blocks, axis=1)

    def fold_j(agg, width):
        # (J*N, B*width) -> (B*N, J*width):
        #   out[b*N + k, j*width + e] = agg[j*N + k, b*width + e]
        out_blocks = []
        for b in range(B):
            jb = [agg[j * N:(j + 1) * N, b * width:(b + 1) * width] for j in range(J)]
            out_blocks.append(jb[0] if J == 1 else jnp.concatenate(jb, axis=1))
        return out_blocks[0] if B == 1 else jnp.concatenate(out_blocks, axis=0)

    A = a_ref[...]                                   # (J*N, N)   bf16
    z_rows = z_ref[...].astype(f32)                  # (B*N, Fin) = [x | h]
    h_rows = h_ref[...].astype(f32)                  # (B*N, H)

    # --- support aggregation for [x, h]: all J supports + all batches in ONE matmul
    z_t = to_lanes(z_rows).astype(bf16)              # (N, B*Fin)
    az = jnp.dot(A, z_t, preferred_element_type=f32)     # (J*N, B*Fin)
    L = fold_j(az, Fin).astype(bf16)                 # (B*N, J*Fin)

    # --- fused r / u / c(x-part) gate matmul: lane-dense 3H output
    gates = jnp.dot(L, wall_ref[...], preferred_element_type=f32) + ball_ref[...]
    r = jax.nn.sigmoid(gates[:, :H])
    u = jax.nn.sigmoid(gates[:, H:2 * H])
    c_x = gates[:, 2 * H:]                           # x-contribution of c (+ bias)

    # --- candidate gate: only A @ (r*h) needs a fresh aggregation pass
    rh_t = to_lanes(r * h_rows).astype(bf16)         # (N, B*H)
    azc = jnp.dot(A, rh_t, preferred_element_type=f32)   # (J*N, B*H)
    Lc = fold_j(azc, H).astype(bf16)                 # (B*N, J*H)
    c = jnp.tanh(c_x + jnp.dot(Lc, wch_ref[...], preferred_element_type=f32))

    new_h = u * h_rows + (1.0 - u) * c
    newh_ref[...] = new_h.astype(newh_ref.dtype)


def _round_bf16(a):
    # Parameters are defined at bf16 precision (rounded once) so the bf16 MXU
    # kernel and the f32 reference see identical parameter values.
    return a.astype(jnp.bfloat16).astype(jnp.float32)


# ---------------------------------------------------------------------------
# DCGRU cell wrapper (parameter init mirrors the torch module)
# ---------------------------------------------------------------------------
class DCGRUCellPallas:
    def __init__(self, key, supports, input_size, output_size, need_proj=False):
        J, N, _ = supports.shape
        fin = input_size + output_size
        H = output_size
        self.input_size = input_size
        self.output_size = output_size
        self.need_proj = need_proj

        # xavier_normal_(gain=1.414) with torch's fan convention for 3-D tensors
        gain = 1.414
        fan_in = fin * H
        fan_out = J * H
        std = gain * np.sqrt(2.0 / (fan_in + fan_out))
        kr, ku, kc, kp1, kp2 = jax.random.split(key, 5)

        self.supports = _round_bf16(supports.astype(jnp.float32))           # (J, N, N)
        self.w_r = _round_bf16(std * jax.random.normal(kr, (J, fin, H), jnp.float32))
        self.w_u = _round_bf16(std * jax.random.normal(ku, (J, fin, H), jnp.float32))
        self.w_c = _round_bf16(std * jax.random.normal(kc, (J, fin, H), jnp.float32))
        self.b_r = jnp.zeros((H,), jnp.float32)
        self.b_u = jnp.zeros((H,), jnp.float32)
        self.b_c = jnp.zeros((H,), jnp.float32)

        if need_proj:  # torch nn.Linear(H, 1) default init
            k = 1.0 / np.sqrt(H)
            self.proj_w = jax.random.uniform(kp1, (H, 1), jnp.float32, -k, k)
            self.proj_b = jax.random.uniform(kp2, (1,), jnp.float32, -k, k)
        else:
            self.proj_w = None
            self.proj_b = None

        # ---- kernel-side fused, pre-laid-out parameters (built once) -------
        Fx = input_size
        # (A @ [x, h]) @ W == (A @ x) @ W[:Fx] + (A @ h) @ W[Fx:]
        # r/u use the full weight; c's x-part is fused into the same matmul by
        # zeroing the h-rows of W_c, so the shared A@x aggregation is reused.
        w_c_xonly = self.w_c.at[:, Fx:, :].set(0.0)
        w_all = jnp.concatenate([self.w_r, self.w_u, w_c_xonly], axis=-1)    # (J, fin, 3H)
        self.k_supports = self.supports.reshape(J * N, N).astype(jnp.bfloat16)
        self.k_w_all = w_all.reshape(J * fin, 3 * H).astype(jnp.bfloat16)
        self.k_w_c_h = self.w_c[:, Fx:, :].reshape(J * H, H).astype(jnp.bfloat16)
        self.k_b_all = jnp.concatenate([self.b_r, self.b_u, self.b_c]).reshape(1, 3 * H)

    def __call__(self, x, state):
        B, N, Fx = x.shape
        H = self.output_size
        assert Fx == self.input_size and state.shape == (B, N, H)

        # [x | h] concat (same op the torch module performs) + free reshapes.
        z = jnp.concatenate([x, state], axis=-1).reshape(B * N, Fx + H)
        h = state.reshape(B * N, H)

        new_h = pl.pallas_call(
            _dcgru_cell_kernel,
            out_shape=jax.ShapeDtypeStruct((B * N, H), jnp.float32),
        )(self.k_supports, z.astype(jnp.float32), h.astype(jnp.float32),
          self.k_w_all, self.k_b_all, self.k_w_c_h)

        new_state = new_h.reshape(B, N, H)
        output = new_state
        if self.need_proj:
            # (B,N,H) @ (H,1): kept in XLA so the Pallas output stays lane-dense
            # (a width-1 kernel output would force masked stores on every row).
            output = new_state @ self.proj_w + self.proj_b
        return output, new_state


# ---------------------------------------------------------------------------
# Encoder / Decoder / seq2seq model (mirrors the torch module structure)
# ---------------------------------------------------------------------------
class DCRNNEncoderPallas:
    def __init__(self, key, supports, args):
        hidden = args['hidden_size']
        num_layers = args['num_layers']
        keys = jax.random.split(key, num_layers)
        cells = [DCGRUCellPallas(keys[0], supports, args['input_size'], hidden)]
        for l in range(1, num_layers):
            cells.append(DCGRUCellPallas(keys[l], supports, hidden, hidden))
        self.cells = cells
        self.init_hidden = jnp.zeros(
            (args['batch_size'], args['num_nodes'], hidden), jnp.float32)

    def __call__(self, inputs):                       # (B, T, N, F)
        seq_length = inputs.shape[1]
        current_input = inputs
        output_hidden = []
        for cell in self.cells:
            hidden_state = self.init_hidden
            output_inner = []
            for t in range(seq_length):
                _, hidden_state = cell(current_input[:, t], hidden_state)
                output_inner.append(hidden_state)
            output_hidden.append(hidden_state)
            current_input = jnp.stack(output_inner, axis=1)
        return output_hidden


class DCRNNDecoderPallas:
    def __init__(self, key, supports, args):
        hidden = args['hidden_size']
        num_layers = args['num_layers']
        keys = jax.random.split(key, num_layers)
        cells = [DCGRUCellPallas(keys[0], supports, 1, hidden)]
        for l in range(1, num_layers - 1):
            cells.append(DCGRUCellPallas(keys[l], supports, hidden, hidden))
        cells.append(DCGRUCellPallas(keys[num_layers - 1], supports, hidden, hidden,
                                     need_proj=True))
        self.cells = cells

    def __call__(self, inputs, init_hidden, teacher_force_ratio):
        seq_length = inputs.shape[1]
        current_input = inputs[:, 0]
        hidden = list(init_hidden)
        outputs = []
        for t in range(1, seq_length):
            next_hidden = []
            output = None
            for i, cell in enumerate(self.cells):
                output, h = cell(current_input, hidden[i])
                current_input = output
                next_hidden.append(h)
            hidden = next_hidden
            outputs.append(output)
            # Teacher forcing is a host-level coin flip in torch; resolved at trace time.
            teacher_force = random.random() < teacher_force_ratio
            current_input = inputs[:, t] if teacher_force else output
        return jnp.stack(outputs, axis=1)


class DCRNNmodelPallas:
    def __init__(self, key, supports, args):
        self.seq_input = args['seq_input']
        self.seq_output = args['seq_output']
        self.cl_decay = args['cl_decay']
        k_enc, k_dec = jax.random.split(key)
        self.encoder = DCRNNEncoderPallas(k_enc, supports, args)
        self.decoder = DCRNNDecoderPallas(k_dec, supports, args)

    @staticmethod
    def compute_ratio(global_step, k):
        return k / (k + math.exp(global_step / k))

    def __call__(self, inputs, is_eval=True, global_step=0):
        source = inputs[:, :self.seq_input]
        target = inputs[:, self.seq_input:self.seq_input + self.seq_output]
        go_symbol = jnp.zeros_like(inputs[:, 0:1])            # (B, 1, N, F)
        target = jnp.concatenate([go_symbol, target], axis=1)
        target = target[..., 0:1]                             # channel 0, keep dim
        context = self.encoder(source)
        ratio = 0.0 if is_eval else self.compute_ratio(global_step, self.cl_decay)
        return self.decoder(target, context, ratio)


# ---------------------------------------------------------------------------
# Pure-JAX references (mirror the torch einsum semantics exactly)
# ---------------------------------------------------------------------------
def _graph_conv_ref(supports, inputs, weight, bias):
    aggr = jnp.einsum('jkm,iml->ijkl', supports, inputs)
    out = jnp.einsum('ijkl,jlm->ikm', aggr, weight)
    return out + bias


def _dcgru_cell_ref(cell, x, state):
    cat = jnp.concatenate([x, state], axis=2)
    r = jax.nn.sigmoid(_graph_conv_ref(cell.supports, cat, cell.w_r, cell.b_r))
    u = jax.nn.sigmoid(_graph_conv_ref(cell.supports, cat, cell.w_u, cell.b_u))
    cat_c = jnp.concatenate([x, r * state], axis=2)
    c = jnp.tanh(_graph_conv_ref(cell.supports, cat_c, cell.w_c, cell.b_c))
    new_state = u * state + (1.0 - u) * c
    output = new_state
    if cell.need_proj:
        output = new_state @ cell.proj_w + cell.proj_b
    return output, new_state


def _encoder_ref(encoder, inputs):
    seq_length = inputs.shape[1]
    current_input = inputs
    output_hidden = []
    for cell in encoder.cells:
        hidden_state = encoder.init_hidden
        output_inner = []
        for t in range(seq_length):
            _, hidden_state = _dcgru_cell_ref(cell, current_input[:, t], hidden_state)
            output_inner.append(hidden_state)
        output_hidden.append(hidden_state)
        current_input = jnp.stack(output_inner, axis=1)
    return output_hidden


def _decoder_ref(decoder, inputs, init_hidden):
    seq_length = inputs.shape[1]
    current_input = inputs[:, 0]
    hidden = list(init_hidden)
    outputs = []
    for t in range(1, seq_length):
        next_hidden = []
        output = None
        for i, cell in enumerate(decoder.cells):
            output, h = _dcgru_cell_ref(cell, current_input, hidden[i])
            current_input = output
            next_hidden.append(h)
        hidden = next_hidden
        outputs.append(output)
        current_input = output          # eval mode: teacher_force_ratio == 0
    return jnp.stack(outputs, axis=1)


def _model_ref(model, inputs):
    source = inputs[:, :model.seq_input]
    target = inputs[:, model.seq_input:model.seq_input + model.seq_output]
    go_symbol = jnp.zeros_like(inputs[:, 0:1])
    target = jnp.concatenate([go_symbol, target], axis=1)[..., 0:1]
    context = _encoder_ref(model.encoder, source)
    return _decoder_ref(model.decoder, target, context)


# ---------------------------------------------------------------------------
if __name__ == "__main__":
    key = jax.random.PRNGKey(0)
    args = dict(batch_size=2, num_nodes=16, input_size=4, hidden_size=32,
                num_layers=2, seq_input=6, seq_output=4, cl_decay=1000.0)
    B, N = args['batch_size'], args['num_nodes']
    T = args['seq_input'] + args['seq_output']
    J = 2

    k_sup, k_in, k_cell, k_h0, k_model = jax.random.split(key, 5)
    supports = jax.random.uniform(k_sup, (J, N, N), jnp.float32) / N  # ~row-normalised
    inputs = jax.random.normal(k_in, (B, T, N, args['input_size']), jnp.float32)

    # --- 1. single DCGRU cell: Pallas kernel vs. torch-equivalent reference ---
    cell = DCGRUCellPallas(k_cell, supports, args['input_size'],
                           args['hidden_size'], need_proj=True)
    x0 = inputs[:, 0]
    h0 = jax.random.normal(k_h0, (B, N, args['hidden_size']), jnp.float32)
    out_k, state_k = cell(x0, h0)
    jax.block_until_ready((out_k, state_k))
    out_r, state_r = _dcgru_cell_ref(cell, x0, h0)
    # tolerance reflects bf16 MXU inputs (f32 accumulation)
    np.testing.assert_allclose(np.asarray(state_k), np.asarray(state_r),
                               rtol=2e-2, atol=2e-2)
    np.testing.assert_allclose(np.asarray(out_k), np.asarray(out_r),
                               rtol=2e-2, atol=2e-2)

    # --- 2. full DCRNN model forward (encoder + decoder), jitted --------------
    model = DCRNNmodelPallas(k_model, supports, args)
    fwd = jax.jit(lambda a: model(a, is_eval=True))
    preds = fwd(inputs)
    jax.block_until_ready(preds)
    assert preds.shape == (B, args['seq_output'], N, 1)

    preds_ref = _model_ref(model, inputs)
    np.testing.assert_allclose(np.asarray(preds), np.asarray(preds_ref),
                               rtol=3e-2, atol=3e-2)

    print("KERNEL_OK")
</pallas_src>

<mosaic_0001>
module attributes {stable_mosaic.version = 11 : i64} {
  func.func @_dcgru_cell_kernel(%arg0: memref<32x16xbf16, #tpu.memory_space<vmem>>, %arg1: memref<32x36xf32, #tpu.memory_space<vmem>>, %arg2: memref<32x32xf32, #tpu.memory_space<vmem>>, %arg3: memref<72x96xbf16, #tpu.memory_space<vmem>>, %arg4: memref<1x96xf32, #tpu.memory_space<vmem>>, %arg5: memref<64x32xbf16, #tpu.memory_space<vmem>>, %arg6: memref<32x32xf32, #tpu.memory_space<vmem>>) attributes {dimension_semantics = [], scalar_prefetch = 0 : i64, scratch_operands = 0 : i64, tpu.core_type = #tpu.core_type<tc>} {
    %c0 = arith.constant 0 : index
    %c0_0 = arith.constant 0 : index
    %0 = vector.load %arg0[%c0, %c0_0] : memref<32x16xbf16, #tpu.memory_space<vmem>>, vector<32x16xbf16>
    %c0_1 = arith.constant 0 : index
    %c0_2 = arith.constant 0 : index
    %1 = vector.load %arg1[%c0_1, %c0_2] : memref<32x36xf32, #tpu.memory_space<vmem>>, vector<32x36xf32>
    %c0_3 = arith.constant 0 : index
    %c0_4 = arith.constant 0 : index
    %2 = vector.load %arg2[%c0_3, %c0_4] : memref<32x32xf32, #tpu.memory_space<vmem>>, vector<32x32xf32>
    %3 = vector.extract_strided_slice %1 {offsets = [0, 0], sizes = [16, 36], strides = [1, 1]} : vector<32x36xf32> to vector<16x36xf32>
    %4 = vector.extract_strided_slice %1 {offsets = [16, 0], sizes = [16, 36], strides = [1, 1]} : vector<32x36xf32> to vector<16x36xf32>
    %5 = tpu.concatenate %3, %4 in 1 : vector<16x36xf32>, vector<16x36xf32> -> vector<16x72xf32>
    %6 = arith.truncf %5 : vector<16x72xf32> to vector<16x72xbf16>
    %cst = arith.constant dense<0.000000e+00> : vector<32x72xf32>
    %7 = tpu.matmul %0, %6, %cst {dimension_numbers = #tpu.dot_dimension_numbers<[1], [0], [0], [1], [0, 0, 1, 1], [], []>} : vector<32x16xbf16>, vector<16x72xbf16>, vector<32x72xf32> -> vector<32x72xf32>
    %8 = vector.extract_strided_slice %7 {offsets = [0, 0], sizes = [16, 36], strides = [1, 1]} : vector<32x72xf32> to vector<16x36xf32>
    %9 = vector.extract_strided_slice %7 {offsets = [16, 0], sizes = [16, 36], strides = [1, 1]} : vector<32x72xf32> to vector<16x36xf32>
    %10 = tpu.concatenate %8, %9 in 1 : vector<16x36xf32>, vector<16x36xf32> -> vector<16x72xf32>
    %11 = vector.extract_strided_slice %7 {offsets = [0, 36], sizes = [16, 36], strides = [1, 1]} : vector<32x72xf32> to vector<16x36xf32>
    %12 = vector.extract_strided_slice %7 {offsets = [16, 36], sizes = [16, 36], strides = [1, 1]} : vector<32x72xf32> to vector<16x36xf32>
    %13 = tpu.concatenate %11, %12 in 1 : vector<16x36xf32>, vector<16x36xf32> -> vector<16x72xf32>
    %14 = tpu.concatenate %10, %13 in 0 : vector<16x72xf32>, vector<16x72xf32> -> vector<32x72xf32>
    %15 = arith.truncf %14 : vector<32x72xf32> to vector<32x72xbf16>
    %c0_5 = arith.constant 0 : index
    %c0_6 = arith.constant 0 : index
    %16 = vector.load %arg3[%c0_5, %c0_6] : memref<72x96xbf16, #tpu.memory_space<vmem>>, vector<72x96xbf16>
    %cst_7 = arith.constant dense<0.000000e+00> : vector<32x96xf32>
    %17 = tpu.matmul %15, %16, %cst_7 {dimension_numbers = #tpu.dot_dimension_numbers<[1], [0], [0], [1], [0, 0, 1, 1], [], []>} : vector<32x72xbf16>, vector<72x96xbf16>, vector<32x96xf32> -> vector<32x96xf32>
    %c0_8 = arith.constant 0 : index
    %c0_9 = arith.constant 0 : index
    %18 = vector.load %arg4[%c0_8, %c0_9] : memref<1x96xf32, #tpu.memory_space<vmem>>, vector<1x96xf32>
    %19 = vector.broadcast %18 : vector<1x96xf32> to vector<32x96xf32>
    %20 = arith.addf %17, %19 : vector<32x96xf32>
    %21 = vector.extract_strided_slice %20 {offsets = [0, 0], sizes = [32, 32], strides = [1, 1]} : vector<32x96xf32> to vector<32x32xf32>
    %22 = arith.negf %21 : vector<32x32xf32>
    %23 = math.exp %22 : vector<32x32xf32>
    %cst_10 = arith.constant 1.000000e+00 : f32
    %24 = vector.broadcast %cst_10 : f32 to vector<32x32xf32>
    %25 = arith.addf %24, %23 : vector<32x32xf32>
    %26 = arith.divf %24, %25 : vector<32x32xf32>
    %27 = vector.extract_strided_slice %20 {offsets = [0, 32], sizes = [32, 32], strides = [1, 1]} : vector<32x96xf32> to vector<32x32xf32>
    %28 = arith.negf %27 : vector<32x32xf32>
    %29 = math.exp %28 : vector<32x32xf32>
    %cst_11 = arith.constant 1.000000e+00 : f32
    %30 = vector.broadcast %cst_11 : f32 to vector<32x32xf32>
    %31 = arith.addf %30, %29 : vector<32x32xf32>
    %32 = arith.divf %30, %31 : vector<32x32xf32>
    %33 = vector.extract_strided_slice %20 {offsets = [0, 64], sizes = [32, 32], strides = [1, 1]} : vector<32x96xf32> to vector<32x32xf32>
    %34 = arith.mulf %26, %2 : vector<32x32xf32>
    %35 = vector.extract_strided_slice %34 {offsets = [0, 0], sizes = [16, 32], strides = [1, 1]} : vector<32x32xf32> to vector<16x32xf32>
    %36 = vector.extract_strided_slice %34 {offsets = [16, 0], sizes = [16, 32], strides = [1, 1]} : vector<32x32xf32> to vector<16x32xf32>
    %37 = tpu.concatenate %35, %36 in 1 : vector<16x32xf32>, vector<16x32xf32> -> vector<16x64xf32>
    %38 = arith.truncf %37 : vector<16x64xf32> to vector<16x64xbf16>
    %cst_12 = arith.constant dense<0.000000e+00> : vector<32x64xf32>
    %39 = tpu.matmul %0, %38, %cst_12 {dimension_numbers = #tpu.dot_dimension_numbers<[1], [0], [0], [1], [0, 0, 1, 1], [], []>} : vector<32x16xbf16>, vector<16x64xbf16>, vector<32x64xf32> -> vector<32x64xf32>
    %40 = vector.extract_strided_slice %39 {offsets = [0, 0], sizes = [16, 32], strides = [1, 1]} : vector<32x64xf32> to vector<16x32xf32>
    %41 = vector.extract_strided_slice %39 {offsets = [16, 0], sizes = [16, 32], strides = [1, 1]} : vector<32x64xf32> to vector<16x32xf32>
    %42 = tpu.concatenate %40, %41 in 1 : vector<16x32xf32>, vector<16x32xf32> -> vector<16x64xf32>
    %43 = vector.extract_strided_slice %39 {offsets = [0, 32], sizes = [16, 32], strides = [1, 1]} : vector<32x64xf32> to vector<16x32xf32>
    %44 = vector.extract_strided_slice %39 {offsets = [16, 32], sizes = [16, 32], strides = [1, 1]} : vector<32x64xf32> to vector<16x32xf32>
    %45 = tpu.concatenate %43, %44 in 1 : vector<16x32xf32>, vector<16x32xf32> -> vector<16x64xf32>
    %46 = tpu.concatenate %42, %45 in 0 : vector<16x64xf32>, vector<16x64xf32> -> vector<32x64xf32>
    %47 = arith.truncf %46 : vector<32x64xf32> to vector<32x64xbf16>
    %c0_13 = arith.constant 0 : index
    %c0_14 = arith.constant 0 : index
    %48 = vector.load %arg5[%c0_13, %c0_14] : memref<64x32xbf16, #tpu.memory_space<vmem>>, vector<64x32xbf16>
    %cst_15 = arith.constant dense<0.000000e+00> : vector<32x32xf32>
    %49 = tpu.matmul %47, %48, %cst_15 {dimension_numbers = #tpu.dot_dimension_numbers<[1], [0], [0], [1], [0, 0, 1, 1], [], []>} : vector<32x64xbf16>, vector<64x32xbf16>, vector<32x32xf32> -> vector<32x32xf32>
    %50 = arith.addf %33, %49 : vector<32x32xf32>
    %51 = math.tanh %50 : vector<32x32xf32>
    %52 = arith.mulf %32, %2 : vector<32x32xf32>
    %cst_16 = arith.constant 1.000000e+00 : f32
    %53 = vector.broadcast %cst_16 : f32 to vector<32x32xf32>
    %54 = arith.subf %53, %32 : vector<32x32xf32>
    %55 = arith.mulf %54, %51 : vector<32x32xf32>
    %56 = arith.addf %52, %55 : vector<32x32xf32>
    %c0_17 = arith.constant 0 : index
    %c0_18 = arith.constant 0 : index
    %57 = vector.load %arg6[%c0_17, %c0_18] : memref<32x32xf32, #tpu.memory_space<vmem>>, vector<32x32xf32>
    tpu.vector_store %arg6[%c0_17, %c0_18], %56 {strides = array<i32>} : memref<32x32xf32, #tpu.memory_space<vmem>>, vector<32x32xf32>,
    return
  }
}

</mosaic_0001>

<llo_original>
// kernel: tpu_custom_call.1
$region0: #{tpu_custom_call.1}
  #allocation0 [shape = 'u32[]', space=smem, size = 0x4, offset = 0x4, fixed_abs, tag = 'smem constant byte address 0x4 - core index']
  #allocation1 [shape = 'u32[72,128]{1,0:T(1,128)}', space=vmem, size = 0x9000, scoped, tag = 'internal scratch']
  %s0 = inlined_call_operand.vmem [shape: bf16[32,16], index: 0, kind: input, shape index: {}]
  %s1 = inlined_call_operand.hbm [shape: f32[32,36], index: 1, kind: input, shape index: {}]
  %s2 = inlined_call_operand.hbm [shape: f32[32,32], index: 2, kind: input, shape index: {}]
  %s3 = inlined_call_operand.vmem [shape: bf16[72,96], index: 3, kind: input, shape index: {}]
  %s4 = inlined_call_operand.vmem [shape: f32[1,96], index: 4, kind: input, shape index: {}]
  %s5 = inlined_call_operand.vmem [shape: bf16[64,32], index: 5, kind: input, shape index: {}]
  %s6 = inlined_call_operand.hbm [shape: f32[32,32], index: 6, kind: output, shape index: {}]
  %s7 = sld [smem:[#allocation0]]
  $region42: #{tpu_custom_call.1} parent=0
    _
  %s9 = ssub.s32 1, %s7
  %s10 = scalar_select 0, %s9, %s7
  $region1: #{tpu_custom_call.1} parent=0
    #allocation2 [shape = 'u8[16384]{0}', space=vmem, size = 0x4000, scoped, tag = 'input window, operand 1, single buffered']
    #allocation3 [shape = 's32[1]{0}', space=sflag, size = 0x4, scoped, tag = 'scoped memory for tpu_custom_call.1']
    #allocation4 [shape = 's32[1]{0}', space=sflag, size = 0x4, scoped, tag = 'scoped memory for tpu_custom_call.1']
    #allocation5 [shape = 'u8[16384]{0}', space=vmem, size = 0x4000, scoped, tag = 'input window, operand 2, single buffered']
    #allocation6 [shape = 's32[1]{0}', space=sflag, size = 0x4, scoped, tag = 'scoped memory for tpu_custom_call.1']
    #allocation7 [shape = 'u8[16384]{0}', space=vmem, size = 0x4000, scoped, tag = 'output window, operand 0, single buffered']
    %11 = vsyncpa [#allocation3], 0
    %12 = vsyncpa [#allocation6], 0
    %13 = vsyncpa [#allocation4], 0
    // Predicated region
    $region2: #{tpu_custom_call.1} parent=1 // pred_check
      _
    $region3: #{tpu_custom_call.1} parent=1 // pred_check_branch
      %15 = sbr.rel (0) target = $region5
    $region4: #{tpu_custom_call.1} parent=1 // pred_region
      _
    $region5: #{tpu_custom_call.1} parent=1 // pred_fallthru
      _
    // Predicated region
    $region6: #{tpu_custom_call.1} parent=1 // pred_check
      _
    $region7: #{tpu_custom_call.1} parent=1 // pred_check_branch
      %17 = sbr.rel (0) target = $region9
    $region8: #{tpu_custom_call.1} parent=1 // pred_region
      %19 = vsyncadd [#allocation3], 0
      %s20 = sshll.u32 %s1, 4
      %s21 = int_to_ptr.hbm [resolvable:$true] %s20
      %s22 = sshll.u32 [#allocation2], 4
      %s23 = int_to_ptr.vmem [resolvable:$true] %s22
      %28 = dma.hbm_to_vmem [thread:$0]  %s21, 512, %s23, [#allocation3], 128, 128, 8
    $region9: #{tpu_custom_call.1} parent=1 // pred_fallthru
      _
    // Predicated region
    $region10: #{tpu_custom_call.1} parent=1 // pred_check
      _
    $region11: #{tpu_custom_call.1} parent=1 // pred_check_branch
      %30 = sbr.rel (0) target = $region13
    $region12: #{tpu_custom_call.1} parent=1 // pred_region
      %32 = vsyncadd [#allocation6], 0
      %s33 = sshll.u32 %s2, 4
      %s34 = int_to_ptr.hbm [resolvable:$true] %s33
      %s35 = sshll.u32 [#allocation5], 4
      %s36 = int_to_ptr.vmem [resolvable:$true] %s35
      %41 = dma.hbm_to_vmem [thread:$0]  %s34, 512, %s36, [#allocation6], 128, 128, 8
    $region13: #{tpu_custom_call.1} parent=1 // pred_fallthru
      _
    // Predicated region
    $region14: #{tpu_custom_call.1} parent=1 // pred_check
      _
    $region15: #{tpu_custom_call.1} parent=1 // pred_check_branch
      %43 = sbr.rel (0) target = $region17
    $region16: #{tpu_custom_call.1} parent=1 // pred_region
      _
    $region17: #{tpu_custom_call.1} parent=1 // pred_fallthru
      _
    // Predicated region
    $region18: #{tpu_custom_call.1} parent=1 // pred_check
      _
    $region19: #{tpu_custom_call.1} parent=1 // pred_check_branch
      %45 = sbr.rel (0) target = $region21
    $region20: #{tpu_custom_call.1} parent=1 // pred_region
      _
    $region21: #{tpu_custom_call.1} parent=1 // pred_fallthru
      _
    // Predicated region
    $region22: #{tpu_custom_call.1} parent=1 // pred_check
      _
    $region23: #{tpu_custom_call.1} parent=1 // pred_check_branch
      %47 = sbr.rel (0) target = $region25
    $region24: #{tpu_custom_call.1} parent=1 // pred_region
      _
    $region25: #{tpu_custom_call.1} parent=1 // pred_fallthru
      _
    // Predicated region
    $region26: #{tpu_custom_call.1} parent=1 // pred_check
      _
    $region27: #{tpu_custom_call.1} parent=1 // pred_check_branch
      %49 = sbr.rel (0) target = $region29
    $region28: #{tpu_custom_call.1} parent=1 // pred_region
      %51 = dma.done [#allocation3], 512
    $region29: #{tpu_custom_call.1} parent=1 // pred_fallthru
      _
    // Predicated region
    $region30: #{tpu_custom_call.1} parent=1 // pred_check
      _
    $region31: #{tpu_custom_call.1} parent=1 // pred_check_branch
      %53 = sbr.rel (0) target = $region33
    $region32: #{tpu_custom_call.1} parent=1 // pred_region
      %55 = dma.done [#allocation6], 512
    $region33: #{tpu_custom_call.1} parent=1 // pred_fallthru
      _
    %v57 = vld [vmem:[%s0] sm:$0xf]
    %v58 = vld [vmem:[%s0 + $0x4] sm:$0xf]
    %v59 = vld [vmem:[%s0 + $0x8] sm:$0xf]
    %v60 = vld [vmem:[%s0 + $0xc] sm:$0xf]
    %v61 = vld [vmem:[#allocation2] sm:$0xff]
    %v62 = vld [vmem:[#allocation2 + $0x8] sm:$0xff]
    %v63 = vld [vmem:[#allocation2 + $0x10] sm:$0xff]
    %v64 = vld [vmem:[#allocation2 + $0x18] sm:$0xff]
    %v65 = vld [vmem:[#allocation5] sm:$0xff]
    %v66 = vld [vmem:[#allocation5 + $0x8] sm:$0xff]
    %v67 = vld [vmem:[#allocation5 + $0x10] sm:$0xff]
    %v68 = vld [vmem:[#allocation5 + $0x18] sm:$0xff]
    %71 = vrot.lane.b32.xlu0 %v63, 36
    %v72 = vpop.permute.xlu0 %71
    %73 = vrot.lane.b32.xlu0 %v64, 36
    %v74 = vpop.permute.xlu0 %73
    %vm77 = vcmask 293888
    %v78 = vsel %vm77, %v61, %v72
    %v79 = vsel %vm77, %v62, %v74
    %v80 = vpack.c.bf16 %v79, %v78
    %v85 = vunpack.c.l.b16 %v57
    %v86 = vunpack.c.l.b16 %v58
    %v87 = vunpack.c.l.b16 %v59
    %v88 = vunpack.c.l.b16 %v60
    %v89 = vpack.c.b16 %v86, %v85
    %v90 = vpack.c.b16 %v88, %v87
    %vm91 = vcmask 130048
    %v93 = vsel %vm91, %v89, 0
    %v96 = vsel %vm91, %v90, 0
    %98 = vmatpush.bf16.msra.mxu0 0
    %99 = vmatpush.bf16.msra.mxu0 0
    %100 = vmatpush.bf16.msra.mxu0 0
    %101 = vmatpush.bf16.msra.mxu0 0
    %102 = vmatpush.bf16.msra.mxu0 0
    %103 = vmatpush.bf16.msra.mxu0 0
    %104 = vmatpush.bf16.msra.mxu0 0
    %105 = vmatpush.bf16.msra.mxu0 %v80
    %106 = vmatmul.bf16.gmra.mxu0 %v93
    %v107 = vpop.f32.mrf.mxu0
    %v108 = vadd.f32 0.0, %v107
    %v109 = vpop.f32.mrf.mxu0
    %v110 = vadd.f32 0.0, %v109
    %111 = vmatmul.bf16.gmra.mxu0 %v96
    %v112 = vpop.f32.mrf.mxu0
    %v113 = vadd.f32 0.0, %v112
    %v114 = vpop.f32.mrf.mxu0
    %v115 = vadd.f32 0.0, %v114
    %116 = vdwg.mxu0
    %119 = vrot.lane.b32.xlu0 %v113, 36
    %v120 = vpop.permute.xlu0 %119
    %121 = vrot.lane.b32.xlu0 %v115, 36
    %v122 = vpop.permute.xlu0 %121
    %v125 = vsel %vm77, %v108, %v120
    %v126 = vsel %vm77, %v110, %v122
    %129 = vrot.lane.b32.xlu0 %v108, 92
    %v130 = vpop.permute.xlu0 %129
    %131 = vrot.lane.b32.xlu0 %v110, 92
    %v132 = vpop.permute.xlu0 %131
    %v135 = vsel %vm77, %v130, %v113
    %v136 = vsel %vm77, %v132, %v115
    %v137 = vpack.c.bf16 %v126, %v125
    %v138 = vpack.c.bf16 %v136, %v135
    %v139 = vld [vmem:[%s3] sm:$0xf]
    %v140 = vld [vmem:[%s3 + $0x4] sm:$0xf]
    %v141 = vld [vmem:[%s3 + $0x8] sm:$0xf]
    %v142 = vld [vmem:[%s3 + $0xc] sm:$0xf]
    %v143 = vld [vmem:[%s3 + $0x10] sm:$0xf]
    %v144 = vld [vmem:[%s3 + $0x14] sm:$0xf]
    %v145 = vld [vmem:[%s3 + $0x18] sm:$0xf]
    %v146 = vld [vmem:[%s3 + $0x1c] sm:$0xf]
    %v147 = vld [vmem:[%s3 + $0x20] sm:$0xf]
    %v148 = vld [vmem:[%s4] sm:$0x1]
    %v150 = vperm.slane %v148, 0
    %v161 = vunpack.c.l.b16 %v139
    %v162 = vunpack.c.l.b16 %v140
    %v163 = vunpack.c.l.b16 %v141
    %v164 = vunpack.c.l.b16 %v142
    %v165 = vunpack.c.l.b16 %v143
    %v166 = vunpack.c.l.b16 %v144
    %v167 = vunpack.c.l.b16 %v145
    %v168 = vunpack.c.l.b16 %v146
    %v169 = vunpack.c.l.b16 %v147
    %v170 = vpack.c.b16 %v162, %v161
    %v171 = vpack.c.b16 %v164, %v163
    %v172 = vpack.c.b16 %v166, %v165
    %v173 = vpack.c.b16 %v168, %v167
    %v174 = vpack.c.b16 %v169, %v169
    %vm179 = vcmask 588800
    %v181 = vsel %vm179, %v137, 0
    %v184 = vsel %vm179, %v138, 0
    %vm186 = vcmask 1043456
    %v188 = vsel %vm186, %v174, 0
    %190 = vmatpush.bf16.msra.mxu0 0
    %191 = vmatpush.bf16.msra.mxu0 0
    %192 = vmatpush.bf16.msra.mxu0 0
    %193 = vmatpush.bf16.msra.mxu0 %v188
    %194 = vmatpush.bf16.msra.mxu0 %v173
    %195 = vmatpush.bf16.msra.mxu0 %v172
    %196 = vmatpush.bf16.msra.mxu0 %v171
    %197 = vmatpush.bf16.msra.mxu0 %v170
    %198 = vmatmul.bf16.gmra.mxu0 %v181
    %v199 = vpop.f32.mrf.mxu0
    %v200 = vadd.f32 %v150, %v199
    %v201 = vpop.f32.mrf.mxu0
    %v202 = vadd.f32 %v150, %v201
    %203 = vmatmul.bf16.gmra.mxu0 %v184
    %v204 = vpop.f32.mrf.mxu0
    %v205 = vadd.f32 %v150, %v204
    %v206 = vpop.f32.mrf.mxu0
    %v207 = vadd.f32 %v150, %v206
    %208 = vdwg.mxu0
    %v209 = vxor.u32 %v200, 2147483648
    %v210 = vxor.u32 %v202, 2147483648
    %v211 = vxor.u32 %v205, 2147483648
    %v212 = vxor.u32 %v207, 2147483648
    %v213 = vmul.f32 %v209, 1.442695
    %v214 = vpow.pop %v213
    %v215 = vmul.f32 %v210, 1.442695
    %v216 = vpow.pop %v215
    %v217 = vmul.f32 %v211, 1.442695
    %v218 = vpow.pop %v217
    %v219 = vmul.f32 %v212, 1.442695
    %v220 = vpow.pop %v219
    %v221 = vadd.f32 %v214, 1.0
    %v222 = vadd.f32 %v216, 1.0
    %v223 = vadd.f32 %v218, 1.0
    %v224 = vadd.f32 %v220, 1.0
    %v225 = vrcp.pop %v221
    %v226 = vmul.f32 %v221, %v225
    %v227 = vsub.f32 1.0, %v226
    %v228 = vmul.f32 %v225, %v227
    %v229 = vadd.f32 %v225, %v228
    %vm230 = vweird.f32 %v221
    %vm231 = vweird.f32 %v225
    %vm232 = vmor %vm230, %vm231
    %v233 = vsel %vm232, %v225, %v229
    %v234 = vand.u32 2147483647, %v221
    %vm235 = vcmp.eq.f32.partialorder %v234, 8.507059e+37
    %v236 = vand.u32 %v221, 2147483648
    %v237 = vor.u32 1.1754944e-38, %v236
    %v238 = vsel %vm235, %v237, %v233
    %v239 = vmul.f32 1.0, %v238
    %v240 = vrcp.pop %v222
    %v241 = vmul.f32 %v222, %v240
    %v242 = vsub.f32 1.0, %v241
    %v243 = vmul.f32 %v240, %v242
    %v244 = vadd.f32 %v240, %v243
    %vm245 = vweird.f32 %v222
    %vm246 = vweird.f32 %v240
    %vm247 = vmor %vm245, %vm246
    %v248 = vsel %vm247, %v240, %v244
    %v249 = vand.u32 2147483647, %v222
    %vm250 = vcmp.eq.f32.partialorder %v249, 8.507059e+37
    %v251 = vand.u32 %v222, 2147483648
    %v252 = vor.u32 1.1754944e-38, %v251
    %v253 = vsel %vm250, %v252, %v248
    %v254 = vmul.f32 1.0, %v253
    %v255 = vrcp.pop %v223
    %v256 = vmul.f32 %v223, %v255
    %v257 = vsub.f32 1.0, %v256
    %v258 = vmul.f32 %v255, %v257
    %v259 = vadd.f32 %v255, %v258
    %vm260 = vweird.f32 %v223
    %vm261 = vweird.f32 %v255
    %vm262 = vmor %vm260, %vm261
    %v263 = vsel %vm262, %v255, %v259
    %v264 = vand.u32 2147483647, %v223
    %vm265 = vcmp.eq.f32.partialorder %v264, 8.507059e+37
    %v266 = vand.u32 %v223, 2147483648
    %v267 = vor.u32 1.1754944e-38, %v266
    %v268 = vsel %vm265, %v267, %v263
    %v269 = vmul.f32 1.0, %v268
    %v270 = vrcp.pop %v224
    %v271 = vmul.f32 %v224, %v270
    %v272 = vsub.f32 1.0, %v271
    %v273 = vmul.f32 %v270, %v272
    %v274 = vadd.f32 %v270, %v273
    %vm275 = vweird.f32 %v224
    %vm276 = vweird.f32 %v270
    %vm277 = vmor %vm275, %vm276
    %v278 = vsel %vm277, %v270, %v274
    %v279 = vand.u32 2147483647, %v224
    %vm280 = vcmp.eq.f32.partialorder %v279, 8.507059e+37
    %v281 = vand.u32 %v224, 2147483648
    %v282 = vor.u32 1.1754944e-38, %v281
    %v283 = vsel %vm280, %v282, %v278
    %v284 = vmul.f32 1.0, %v283
    %v285 = vmul.f32 %v239, %v65
    %v286 = vmul.f32 %v254, %v66
    %v287 = vmul.f32 %v269, %v67
    %v288 = vmul.f32 %v284, %v68
    %291 = vrot.lane.b32.xlu0 %v287, 32
    %v292 = vpop.permute.xlu0 %291
    %293 = vrot.lane.b32.xlu0 %v288, 32
    %v294 = vpop.permute.xlu0 %293
    %vm297 = vcmask 261120
    %v298 = vsel %vm297, %v285, %v292
    %v299 = vsel %vm297, %v286, %v294
    %v300 = vpack.c.bf16 %v299, %v298
    %301 = vmatpush.bf16.msra.mxu0 0
    %302 = vmatpush.bf16.msra.mxu0 0
    %303 = vmatpush.bf16.msra.mxu0 0
    %304 = vmatpush.bf16.msra.mxu0 0
    %305 = vmatpush.bf16.msra.mxu0 0
    %306 = vmatpush.bf16.msra.mxu0 0
    %307 = vmatpush.bf16.msra.mxu0 0
    %308 = vmatpush.bf16.msra.mxu0 %v300
    %309 = vmatmul.bf16.gmra.mxu0 %v93
    %v310 = vpop.f32.mrf.mxu0
    %v311 = vadd.f32 0.0, %v310
    %v312 = vpop.f32.mrf.mxu0
    %v313 = vadd.f32 0.0, %v312
    %314 = vmatmul.bf16.gmra.mxu0 %v96
    %v315 = vpop.f32.mrf.mxu0
    %v316 = vadd.f32 0.0, %v315
    %v317 = vpop.f32.mrf.mxu0
    %v318 = vadd.f32 0.0, %v317
    %319 = vdwg.mxu0
    %322 = vrot.lane.b32.xlu0 %v316, 32
    %v323 = vpop.permute.xlu0 %322
    %324 = vrot.lane.b32.xlu0 %v318, 32
    %v325 = vpop.permute.xlu0 %324
    %v328 = vsel %vm297, %v311, %v323
    %v329 = vsel %vm297, %v313, %v325
    %332 = vrot.lane.b32.xlu0 %v311, 96
    %v333 = vpop.permute.xlu0 %332
    %334 = vrot.lane.b32.xlu0 %v313, 96
    %v335 = vpop.permute.xlu0 %334
    %v338 = vsel %vm297, %v333, %v316
    %v339 = vsel %vm297, %v335, %v318
    %v340 = vpack.c.bf16 %v329, %v328
    %v341 = vpack.c.bf16 %v339, %v338
    %v342 = vld [vmem:[%s5] sm:$0xf]
    %v343 = vld [vmem:[%s5 + $0x4] sm:$0xf]
    %v344 = vld [vmem:[%s5 + $0x8] sm:$0xf]
    %v345 = vld [vmem:[%s5 + $0xc] sm:$0xf]
    %v346 = vld [vmem:[%s5 + $0x10] sm:$0xf]
    %v347 = vld [vmem:[%s5 + $0x14] sm:$0xf]
    %v348 = vld [vmem:[%s5 + $0x18] sm:$0xf]
    %v349 = vld [vmem:[%s5 + $0x1c] sm:$0xf]
    %v358 = vunpack.c.l.b16 %v342
    %v359 = vunpack.c.l.b16 %v343
    %v360 = vunpack.c.l.b16 %v344
    %v361 = vunpack.c.l.b16 %v345
    %v362 = vunpack.c.l.b16 %v346
    %v363 = vunpack.c.l.b16 %v347
    %v364 = vunpack.c.l.b16 %v348
    %v365 = vunpack.c.l.b16 %v349
    %v366 = vpack.c.b16 %v359, %v358
    %v367 = vpack.c.b16 %v361, %v360
    %v368 = vpack.c.b16 %v363, %v362
    %v369 = vpack.c.b16 %v365, %v364
    %vm374 = vcmask 523264
    %v376 = vsel %vm374, %v340, 0
    %v379 = vsel %vm374, %v341, 0
    %381 = vmatpush.bf16.msra.mxu0 0
    %382 = vmatpush.bf16.msra.mxu0 0
    %383 = vmatpush.bf16.msra.mxu0 0
    %384 = vmatpush.bf16.msra.mxu0 0
    %385 = vmatpush.bf16.msra.mxu0 %v369
    %386 = vmatpush.bf16.msra.mxu0 %v368
    %387 = vmatpush.bf16.msra.mxu0 %v367
    %388 = vmatpush.bf16.msra.mxu0 %v366
    %389 = vmatmul.bf16.gmra.mxu0 %v376
    %v390 = vpop.f32.mrf.mxu0
    %v391 = vadd.f32 0.0, %v390
    %v392 = vpop.f32.mrf.mxu0
    %v393 = vadd.f32 0.0, %v392
    %394 = vmatmul.bf16.gmra.mxu0 %v379
    %v395 = vpop.f32.mrf.mxu0
    %v396 = vadd.f32 0.0, %v395
    %v397 = vpop.f32.mrf.mxu0
    %v398 = vadd.f32 0.0, %v397
    %399 = vdwg.mxu0
    %404 = vrot.lane.b32.xlu0 %v391, 64
    %v405 = vpop.permute.xlu0 %404
    %406 = vrot.lane.b32.xlu0 %v393, 64
    %v407 = vpop.permute.xlu0 %406
    %408 = vrot.lane.b32.xlu0 %v396, 64
    %v409 = vpop.permute.xlu0 %408
    %410 = vrot.lane.b32.xlu0 %v398, 64
    %v411 = vpop.permute.xlu0 %410
    %v416 = vadd.f32 %v200, %v405
    %v417 = vadd.f32 %v202, %v407
    %v418 = vadd.f32 %v205, %v409
    %v419 = vadd.f32 %v207, %v411
    %v420 = vtanh.pop %v416
    %v421 = vtanh.pop %v417
    %v422 = vtanh.pop %v418
    %v423 = vtanh.pop %v419
    %428 = vrot.lane.b32.xlu0 %v65, 32
    %v429 = vpop.permute.xlu0 %428
    %430 = vrot.lane.b32.xlu0 %v66, 32
    %v431 = vpop.permute.xlu0 %430
    %432 = vrot.lane.b32.xlu0 %v67, 32
    %v433 = vpop.permute.xlu0 %432
    %434 = vrot.lane.b32.xlu0 %v68, 32
    %v435 = vpop.permute.xlu0 %434
    %v440 = vmul.f32 %v239, %v429
    %v441 = vmul.f32 %v254, %v431
    %v442 = vmul.f32 %v269, %v433
    %v443 = vmul.f32 %v284, %v435
    %v444 = vsub.f32 1.0, %v239
    %v445 = vsub.f32 1.0, %v254
    %v446 = vsub.f32 1.0, %v269
    %v447 = vsub.f32 1.0, %v284
    %452 = vrot.lane.b32.xlu0 %v420, 96
    %v453 = vpop.permute.xlu0 %452
    %454 = vrot.lane.b32.xlu0 %v421, 96
    %v455 = vpop.permute.xlu0 %454
    %456 = vrot.lane.b32.xlu0 %v422, 96
    %v457 = vpop.permute.xlu0 %456
    %458 = vrot.lane.b32.xlu0 %v423, 96
    %v459 = vpop.permute.xlu0 %458
    %v464 = vmul.f32 %v444, %v453
    %v465 = vmul.f32 %v445, %v455
    %v466 = vmul.f32 %v446, %v457
    %v467 = vmul.f32 %v447, %v459
    %v468 = vadd.f32 %v440, %v464
    %v469 = vadd.f32 %v441, %v465
    %v470 = vadd.f32 %v442, %v466
    %v471 = vadd.f32 %v443, %v467
    %476 = vrot.lane.b32.xlu0 %v468, 96
    %v477 = vpop.permute.xlu0 %476
    %478 = vrot.lane.b32.xlu0 %v469, 96
    %v479 = vpop.permute.xlu0 %478
    %480 = vrot.lane.b32.xlu0 %v470, 96
    %v481 = vpop.permute.xlu0 %480
    %482 = vrot.lane.b32.xlu0 %v471, 96
    %v483 = vpop.permute.xlu0 %482
    %488 = vst.msk [vmem:[#allocation7] sm:$0xff] %vm297, %v477
    %489 = vst.msk [vmem:[#allocation7 + $0x8] sm:$0xff] %vm297, %v479
    %490 = vst.msk [vmem:[#allocation7 + $0x10] sm:$0xff] %vm297, %v481
    %491 = vst.msk [vmem:[#allocation7 + $0x18] sm:$0xff] %vm297, %v483
    // Predicated region
    $region34: #{tpu_custom_call.1} parent=1 // pred_check
      _
    $region35: #{tpu_custom_call.1} parent=1 // pred_check_branch
      %493 = sbr.rel (0) target = $region37
    $region36: #{tpu_custom_call.1} parent=1 // pred_region
      %495 = vsyncadd [#allocation4], 0
      %s496 = sshll.u32 [#allocation7], 4
      %s497 = int_to_ptr.vmem [resolvable:$true] %s496
      %s498 = sshll.u32 %s6, 4
      %s499 = int_to_ptr.hbm [resolvable:$true] %s498
      %504 = dma.vmem_to_hbm [thread:$0]  %s497, 512, %s499, [#allocation4], 128, 128, 8
    $region37: #{tpu_custom_call.1} parent=1 // pred_fallthru
      _
    // Predicated region
    $region38: #{tpu_custom_call.1} parent=1 // pred_check
      _
    $region39: #{tpu_custom_call.1} parent=1 // pred_check_branch
      %506 = sbr.rel (0) target = $region41
    $region40: #{tpu_custom_call.1} parent=1 // pred_region
      %508 = dma.done [#allocation4], 512
    $region41: #{tpu_custom_call.1} parent=1 // pred_fallthru
      _
    %509 = vsyncpa [#allocation3], 1
    %510 = vsyncpa [#allocation6], 1
    %511 = vsyncpa [#allocation4], 1

</llo_original>
